<compile_context>
chip_gen: v7x
topology: tpu7x:2x2x1
jax: 0.10.0
libtpu: 0.0.40
codegen_flags: <defaults>
</compile_context>

<pallas_src>
import math
import functools

import jax
import jax.numpy as jnp
from jax import lax
from jax.experimental import pallas as pl
from jax.experimental.pallas import tpu as pltpu


# ----------------------------------------------------------------------------
# Buffer setup (equivalent of PositionalEncoding._generate_pe) — one-time glue.
# ----------------------------------------------------------------------------
def generate_pe(max_len: int, d_model: int) -> jnp.ndarray:
    """Return the (max_len, 1, d_model) sinusoidal positional-encoding table."""
    position = jnp.arange(max_len, dtype=jnp.float32)[:, None]            # (L, 1)
    div_term = jnp.exp(
        jnp.arange(0, d_model, 2, dtype=jnp.float32)
        * (-math.log(10000.0) / d_model)
    )                                                                      # (D/2,)
    pe = jnp.zeros((max_len, d_model), dtype=jnp.float32)
    pe = pe.at[:, 0::2].set(jnp.sin(position * div_term))
    pe = pe.at[:, 1::2].set(jnp.cos(position * div_term))
    # unsqueeze(0).transpose(0, 1)  ->  (max_len, 1, d_model)
    return pe[:, None, :]


# ----------------------------------------------------------------------------
# Tile sizing.
# ----------------------------------------------------------------------------
_TILE_BUDGET_BYTES = 20 * 1024 * 1024   # live pipeline VMEM target (all gens)
_VMEM_LIMIT_BYTES = 40 * 1024 * 1024    # scoped-VMEM limit (< 64 MiB v7x / 128 MiB v5e,v6e)
_MIN_GRID_STEPS = 8                     # keep pipeline overlapped; even -> v7x 2-TC balance


def _choose_seq_tile(S: int, B: int, D: int, itemsize: int, training: bool) -> int:
    # Double-buffered BlockSpec streams: x tile + out tile + 2-D pe tile.
    xo_bytes = 2 * B * D * itemsize          # x + out per seq row
    pe_bytes = D * itemsize                  # pe per seq row (no batch dim)
    # Dropout temporaries (not double-buffered): u32 hash bits + f32 intermediate.
    tmp_bytes = (2 * B * D * 4) if training else 0
    bytes_per_row = 2 * (xo_bytes + pe_bytes) + tmp_bytes
    ts = max(1, _TILE_BUDGET_BYTES // bytes_per_row)
    # Guarantee a multi-step grid when the sequence allows it.
    ts = min(ts, pl.cdiv(S, _MIN_GRID_STEPS))
    ts = max(1, min(ts, S))
    if ts == S:
        return int(ts)                       # full-extent block is always legal
    # ts < S: the 2-D pe block uses ts as its sublane dim -> multiple of 8.
    ts = max(8, ts - (ts % 8))
    return int(min(ts, S))


# ----------------------------------------------------------------------------
# Pallas kernels
# ----------------------------------------------------------------------------
def _pe_add_kernel(x_ref, pe_ref, o_ref):
    # x_ref: (TS, B, D), pe_ref: (TS, D) — broadcast over batch in-kernel.
    o_ref[...] = x_ref[...] + pe_ref[...][:, None, :]


def _pe_add_dropout_kernel(seed_ref, x_ref, pe_ref, o_ref, *, rate, seq_block):
    y = x_ref[...] + pe_ref[...][:, None, :]
    shape = y.shape                                           # (TS, B, D), static

    # Counter = global flat element index -> dropout mask independent of tiling.
    s0 = (pl.program_id(0) * seq_block).astype(jnp.uint32)
    idx_s = lax.broadcasted_iota(jnp.int32, shape, 0).astype(jnp.uint32) + s0
    idx_b = lax.broadcasted_iota(jnp.int32, shape, 1).astype(jnp.uint32)
    idx_d = lax.broadcasted_iota(jnp.int32, shape, 2).astype(jnp.uint32)
    ctr = (idx_s * jnp.uint32(shape[1]) + idx_b) * jnp.uint32(shape[2]) + idx_d

    # lowbias32-style integer hash; seed is mixed through the full avalanche,
    # so per-call / per-element bits are decorrelated (no sequential seeds).
    seed = seed_ref[0].astype(jnp.uint32)
    h = ctr ^ (seed * jnp.uint32(0x9E3779B9) + jnp.uint32(0x7F4A7C15))
    h = (h ^ (h >> 16)) * jnp.uint32(0x7FEB352D)
    h = (h ^ (h >> 15)) * jnp.uint32(0x846CA68B)
    h = h ^ (h >> 16)

    # Integer-threshold compare: P(h >= thresh) = 1 - rate. No float convert.
    thresh = jnp.uint32(min(int(rate * 4294967296.0), 4294967295))
    scale = jnp.asarray(1.0 / (1.0 - rate), y.dtype)
    o_ref[...] = jnp.where(h >= thresh, y * scale, jnp.zeros((), y.dtype))


# ----------------------------------------------------------------------------
# Module wrapper
# ----------------------------------------------------------------------------
class PositionalEncoding:
    """Same forward semantics as the PyTorch module (add PE, then dropout)."""

    def __init__(self, d_model: int, dropout: float = 0.1, max_len: int = 512):
        self.d_model = d_model
        self.dropout_rate = float(dropout)
        self.max_len = max_len
        self.pe = generate_pe(max_len, d_model)  # (max_len, 1, d_model) buffer
        self._pe_cache = {}                      # (S, dtype) -> (S, D) table

    def _pe_for(self, S: int, dtype) -> jnp.ndarray:
        # "dynamic extension if needed" — regenerate the buffer if seq too long.
        if S > self.pe.shape[0]:
            self.max_len = S
            self.pe = generate_pe(S, self.d_model)
            self._pe_cache.clear()
        key = (S, jnp.dtype(dtype).name)
        if key not in self._pe_cache:
            # 2-D (S, D) stream for the kernel; cast to x.dtype (PyTorch keeps
            # f32 and promotes — negligible difference for low-precision x).
            self._pe_cache[key] = self.pe[:S, 0, :].astype(dtype)
        return self._pe_cache[key]

    def __call__(self, x: jnp.ndarray, *, training: bool = False, seed: int = 0):
        # x: (seq_len, batch, d_model)
        S, B, D = x.shape
        assert D == self.d_model
        pe2d = self._pe_for(S, x.dtype)            # (S, D)

        use_dropout = training and self.dropout_rate > 0.0
        if use_dropout and self.dropout_rate >= 1.0:
            return jnp.zeros_like(x)               # nn.Dropout(p=1): drop all

        itemsize = jnp.dtype(x.dtype).itemsize
        ts = _choose_seq_tile(S, B, D, itemsize, use_dropout)
        grid = (pl.cdiv(S, ts),)

        x_spec = pl.BlockSpec((ts, B, D), lambda s: (s, 0, 0))
        pe_spec = pl.BlockSpec((ts, D), lambda s: (s, 0))
        out_spec = pl.BlockSpec((ts, B, D), lambda s: (s, 0, 0))
        out_shape = jax.ShapeDtypeStruct((S, B, D), x.dtype)
        cparams = pltpu.CompilerParams(
            dimension_semantics=("parallel",),      # seq axis: 2-TC sharding on v7x
            vmem_limit_bytes=_VMEM_LIMIT_BYTES,
        )

        if not use_dropout:
            # NOTE: inside a larger jitted model prefer `x + pe2d[:, None, :]`
            # and let XLA fuse the add into the neighboring op (saves one full
            # HBM round trip); the standalone Pallas path is kept here so the
            # kernel itself is exercised and checked.
            return pl.pallas_call(
                _pe_add_kernel,
                out_shape=out_shape,
                grid=grid,
                in_specs=[x_spec, pe_spec],
                out_specs=out_spec,
                input_output_aliases={0: 0},        # in-place when x is donated
                compiler_params=cparams,
            )(x, pe2d)

        seed_arr = jnp.asarray([seed], dtype=jnp.int32)
        kernel = functools.partial(
            _pe_add_dropout_kernel, rate=self.dropout_rate, seq_block=ts)
        return pl.pallas_call(
            kernel,
            out_shape=out_shape,
            grid=grid,
            in_specs=[
                pl.BlockSpec(memory_space=pltpu.MemorySpace.SMEM),  # seed scalar
                x_spec,
                pe_spec,
            ],
            out_specs=out_spec,
            input_output_aliases={1: 0},            # alias x (arg 1) to output
            compiler_params=cparams,
        )(seed_arr, x, pe2d)


# ----------------------------------------------------------------------------
# Demo / correctness check
# ----------------------------------------------------------------------------
if __name__ == "__main__":
    seq_len, batch, d_model = 8, 2, 32

    key = jax.random.PRNGKey(0)
    x = jax.random.normal(key, (seq_len, batch, d_model), dtype=jnp.float32)

    module = PositionalEncoding(d_model=d_model, dropout=0.5, max_len=512)

    # Pure-JAX reference, computed up front.
    y_ref = x + generate_pe(512, d_model)[:seq_len].astype(x.dtype)

    # --- eval mode: deterministic x + pe ------------------------------------
    y = jax.block_until_ready(module(x, training=False))
    assert y.shape == (seq_len, batch, d_model)
    assert jnp.allclose(y, y_ref, atol=1e-6, rtol=1e-6)

    # --- training mode: inverted dropout on top of the add ------------------
    y_drop = jax.block_until_ready(module(x, training=True, seed=1234))
    scale = 1.0 / (1.0 - module.dropout_rate)
    kept = jnp.isclose(y_drop, y_ref * scale, atol=1e-5, rtol=1e-5)
    dropped = jnp.isclose(y_drop, 0.0, atol=1e-6)
    assert y_drop.shape == (seq_len, batch, d_model)
    assert bool(jnp.all(kept | dropped))                       # values are valid
    frac_dropped = float(jnp.mean(dropped.astype(jnp.float32)))
    assert 0.0 < frac_dropped < 1.0                            # mask is non-trivial

    print("KERNEL_OK")
</pallas_src>

<mosaic_0001>
module attributes {stable_mosaic.version = 11 : i64} {
  func.func @_pe_add_kernel(%arg0: i32, %arg1: memref<8x2x32xf32, #tpu.memory_space<vmem>>, %arg2: memref<8x32xf32, #tpu.memory_space<vmem>>, %arg3: memref<8x2x32xf32, #tpu.memory_space<vmem>>) attributes {dimension_semantics = [#tpu.dimension_semantics<parallel>], iteration_bounds = array<i64: 1>, scalar_prefetch = 0 : i64, scratch_operands = 0 : i64, tpu.core_type = #tpu.core_type<tc>, window_params = [{transform_indices = @transform_0, window_bounds = array<i64: 8, 2, 32>}, {transform_indices = @transform_1, window_bounds = array<i64: 8, 32>}, {transform_indices = @transform_2, window_bounds = array<i64: 8, 2, 32>}]} {
    %c0 = arith.constant 0 : index
    %c0_0 = arith.constant 0 : index
    %c0_1 = arith.constant 0 : index
    %0 = vector.load %arg1[%c0, %c0_0, %c0_1] : memref<8x2x32xf32, #tpu.memory_space<vmem>>, vector<8x2x32xf32>
    %c0_2 = arith.constant 0 : index
    %c0_3 = arith.constant 0 : index
    %1 = vector.load %arg2[%c0_2, %c0_3] : memref<8x32xf32, #tpu.memory_space<vmem>>, vector<8x32xf32>
    %2 = vector.shape_cast %1 : vector<8x32xf32> to vector<8x1x32xf32>
    %3 = vector.broadcast %2 : vector<8x1x32xf32> to vector<8x2x32xf32>
    %4 = arith.addf %0, %3 : vector<8x2x32xf32>
    %c0_4 = arith.constant 0 : index
    %c0_5 = arith.constant 0 : index
    %c0_6 = arith.constant 0 : index
    %5 = vector.load %arg3[%c0_4, %c0_5, %c0_6] : memref<8x2x32xf32, #tpu.memory_space<vmem>>, vector<8x2x32xf32>
    tpu.vector_store %arg3[%c0_4, %c0_5, %c0_6], %4 {strides = array<i32>} : memref<8x2x32xf32, #tpu.memory_space<vmem>>, vector<8x2x32xf32>,
    return
  }
  func.func @transform_0(%arg0: i32) -> (i32, i32, i32) {
    %c0_i32 = arith.constant 0 : i32
    %c0_i32_0 = arith.constant 0 : i32
    %c0_i32_1 = arith.constant 0 : i32
    return %arg0, %c0_i32, %c0_i32_0 : i32, i32, i32
  }
  func.func @transform_1(%arg0: i32) -> (i32, i32) {
    %c0_i32 = arith.constant 0 : i32
    %c0_i32_0 = arith.constant 0 : i32
    return %arg0, %c0_i32 : i32, i32
  }
  func.func @transform_2(%arg0: i32) -> (i32, i32, i32) {
    %c0_i32 = arith.constant 0 : i32
    %c0_i32_0 = arith.constant 0 : i32
    %c0_i32_1 = arith.constant 0 : i32
    return %arg0, %c0_i32, %c0_i32_0 : i32, i32, i32
  }
}

</mosaic_0001>

<llo_original>
// kernel: tpu_custom_call.1
$region0: #{tpu_custom_call.1}
  #allocation0 [shape = 'u32[]', space=smem, size = 0x4, offset = 0x4, fixed_abs, tag = 'smem constant byte address 0x4 - core index']
  #allocation1 [shape = 'u32[144,128]{1,0:T(1,128)}', space=vmem, size = 0x12000, scoped, tag = 'internal scratch']
  %s0 = inlined_call_operand.hbm [shape: f32[8,2,32], index: 0, kind: input, shape index: {}, may-alias: {0,2}]
  %s1 = inlined_call_operand.vmem [shape: f32[8,32], index: 1, kind: input, shape index: {}]
  %s2 = inlined_call_operand.hbm [shape: f32[8,2,32], index: 2, kind: output, shape index: {}, may-alias: {0,2}]
  %s3 = sld [smem:[#allocation0]]
  $region22: #{tpu_custom_call.1} parent=0
    _
  %s5 = ssub.s32 1, %s3
  %s6 = scalar_select 0, %s5, %s3
  $region1: #{tpu_custom_call.1} parent=0
    #allocation2 [shape = 'u8[8192]{0}', space=vmem, size = 0x2000, scoped, tag = 'input window, operand 0, single buffered']
    #allocation3 [shape = 's32[1]{0}', space=sflag, size = 0x4, scoped, tag = 'scoped memory for tpu_custom_call.1']
    #allocation4 [shape = 's32[1]{0}', space=sflag, size = 0x4, scoped, tag = 'scoped memory for tpu_custom_call.1']
    #allocation5 [shape = 'u8[8192]{0}', space=vmem, size = 0x2000, scoped, tag = 'output window, operand 0, single buffered']
    %7 = vsyncpa [#allocation3], 0
    %8 = vsyncpa [#allocation4], 0
    // Predicated region
    $region2: #{tpu_custom_call.1} parent=1 // pred_check
      _
    $region3: #{tpu_custom_call.1} parent=1 // pred_check_branch
      %10 = sbr.rel (0) target = $region5
    $region4: #{tpu_custom_call.1} parent=1 // pred_region
      %s12 = ssub.s32 256, 256
      %13 = vsyncadd [#allocation3], %s12
      %s14 = sshll.u32 [#allocation2], 4
      %s15 = int_to_ptr.vmem [resolvable:$true] %s14
      %20 = dma.hbm_to_vmem [thread:$0]  %s0, 256, %s15, [#allocation3], 32, 32, 2
    $region5: #{tpu_custom_call.1} parent=1 // pred_fallthru
      _
    // Predicated region
    $region6: #{tpu_custom_call.1} parent=1 // pred_check
      _
    $region7: #{tpu_custom_call.1} parent=1 // pred_check_branch
      %22 = sbr.rel (0) target = $region9
    $region8: #{tpu_custom_call.1} parent=1 // pred_region
      _
    $region9: #{tpu_custom_call.1} parent=1 // pred_fallthru
      _
    // Predicated region
    $region10: #{tpu_custom_call.1} parent=1 // pred_check
      _
    $region11: #{tpu_custom_call.1} parent=1 // pred_check_branch
      %24 = sbr.rel (0) target = $region13
    $region12: #{tpu_custom_call.1} parent=1 // pred_region
      %25 = dma.done [#allocation3], 256
    $region13: #{tpu_custom_call.1} parent=1 // pred_fallthru
      _
    %v26 = vld [vmem:[#allocation2] sm:$0x3]
    %v27 = vld [vmem:[#allocation2 + $0x2] sm:$0x3]
    %v28 = vld [vmem:[#allocation2 + $0x4] sm:$0x3]
    %v29 = vld [vmem:[#allocation2 + $0x6] sm:$0x3]
    %v30 = vld [vmem:[#allocation2 + $0x8] sm:$0x3]
    %v31 = vld [vmem:[#allocation2 + $0xa] sm:$0x3]
    %v32 = vld [vmem:[#allocation2 + $0xc] sm:$0x3]
    %v33 = vld [vmem:[#allocation2 + $0xe] sm:$0x3]
    %v34 = vld [vmem:[%s1] sm:$0xff]
    %v36 = vcombine.high %v34, %v34
    %v38 = vunpack.c.l.s4 1966171168
    %v39 = vunpack.c.0.s8 %v38
    %v40 = vlaneseq
    %v41 = vshrl.u32 %v40, 7
    %v42 = vsub.s32 %v39, %v41
    %v43 = vrot.slane %v34, %v42
    %v45 = vunpack.c.l.s4 1966171168
    %v46 = vunpack.c.0.s8 %v45
    %v47 = vlaneseq
    %v48 = vshrl.u32 %v47, 7
    %v49 = vsub.s32 %v46, %v48
    %v50 = vrot.slane %v36, %v49
    %v51 = vcombine.high %v43, %v43
    %v52 = vcombine.high %v50, %v50
    %v54 = vunpack.c.l.s4 1966171168
    %v55 = vunpack.c.0.s8 %v54
    %v56 = vlaneseq
    %v57 = vshrl.u32 %v56, 7
    %v58 = vsub.s32 %v55, %v57
    %v59 = vrot.slane %v43, %v58
    %v61 = vunpack.c.l.s4 1966171168
    %v62 = vunpack.c.0.s8 %v61
    %v63 = vlaneseq
    %v64 = vshrl.u32 %v63, 7
    %v65 = vsub.s32 %v62, %v64
    %v66 = vrot.slane %v50, %v65
    %v68 = vunpack.c.l.s4 1966171168
    %v69 = vunpack.c.0.s8 %v68
    %v70 = vlaneseq
    %v71 = vshrl.u32 %v70, 7
    %v72 = vsub.s32 %v69, %v71
    %v73 = vrot.slane %v51, %v72
    %v75 = vunpack.c.l.s4 1966171168
    %v76 = vunpack.c.0.s8 %v75
    %v77 = vlaneseq
    %v78 = vshrl.u32 %v77, 7
    %v79 = vsub.s32 %v76, %v78
    %v80 = vrot.slane %v52, %v79
    %v81 = vcombine.high %v59, %v59
    %v82 = vcombine.high %v66, %v66
    %v83 = vcombine.high %v73, %v73
    %v84 = vcombine.high %v80, %v80
    %v85 = vlaneseq
    %v86 = vshrl.u32 %v85, 7
    %v87 = vsub.s32 0, %v86
    %v88 = vrot.slane %v59, %v87
    %v89 = vlaneseq
    %v90 = vshrl.u32 %v89, 7
    %v91 = vsub.s32 0, %v90
    %v92 = vrot.slane %v73, %v91
    %v93 = vlaneseq
    %v94 = vshrl.u32 %v93, 7
    %v95 = vsub.s32 0, %v94
    %v96 = vrot.slane %v81, %v95
    %v97 = vlaneseq
    %v98 = vshrl.u32 %v97, 7
    %v99 = vsub.s32 0, %v98
    %v100 = vrot.slane %v83, %v99
    %v101 = vlaneseq
    %v102 = vshrl.u32 %v101, 7
    %v103 = vsub.s32 0, %v102
    %v104 = vrot.slane %v66, %v103
    %v105 = vlaneseq
    %v106 = vshrl.u32 %v105, 7
    %v107 = vsub.s32 0, %v106
    %v108 = vrot.slane %v80, %v107
    %v109 = vlaneseq
    %v110 = vshrl.u32 %v109, 7
    %v111 = vsub.s32 0, %v110
    %v112 = vrot.slane %v82, %v111
    %v113 = vlaneseq
    %v114 = vshrl.u32 %v113, 7
    %v115 = vsub.s32 0, %v114
    %v116 = vrot.slane %v84, %v115
    %v125 = vadd.f32 %v26, %v88
    %v126 = vadd.f32 %v27, %v92
    %v127 = vadd.f32 %v28, %v96
    %v128 = vadd.f32 %v29, %v100
    %v129 = vadd.f32 %v30, %v104
    %v130 = vadd.f32 %v31, %v108
    %v131 = vadd.f32 %v32, %v112
    %v132 = vadd.f32 %v33, %v116
    %vm133 = vcmask 254976
    %134 = vst.msk [vmem:[#allocation5] sm:$0x3] %vm133, %v125
    %135 = vst.msk [vmem:[#allocation5 + $0x2] sm:$0x3] %vm133, %v126
    %136 = vst.msk [vmem:[#allocation5 + $0x4] sm:$0x3] %vm133, %v127
    %137 = vst.msk [vmem:[#allocation5 + $0x6] sm:$0x3] %vm133, %v128
    %138 = vst.msk [vmem:[#allocation5 + $0x8] sm:$0x3] %vm133, %v129
    %139 = vst.msk [vmem:[#allocation5 + $0xa] sm:$0x3] %vm133, %v130
    %140 = vst.msk [vmem:[#allocation5 + $0xc] sm:$0x3] %vm133, %v131
    %141 = vst.msk [vmem:[#allocation5 + $0xe] sm:$0x3] %vm133, %v132
    // Predicated region
    $region14: #{tpu_custom_call.1} parent=1 // pred_check
      _
    $region15: #{tpu_custom_call.1} parent=1 // pred_check_branch
      %143 = sbr.rel (0) target = $region17
    $region16: #{tpu_custom_call.1} parent=1 // pred_region
      %s145 = ssub.s32 256, 256
      %146 = vsyncadd [#allocation4], %s145
      %s147 = sshll.u32 [#allocation5], 4
      %s148 = int_to_ptr.vmem [resolvable:$true] %s147
      %153 = dma.vmem_to_hbm [thread:$0]  %s148, 256, %s2, [#allocation4], 32, 32, 2
    $region17: #{tpu_custom_call.1} parent=1 // pred_fallthru
      _
    // Predicated region
    $region18: #{tpu_custom_call.1} parent=1 // pred_check
      _
    $region19: #{tpu_custom_call.1} parent=1 // pred_check_branch
      %155 = sbr.rel (0) target = $region21
    $region20: #{tpu_custom_call.1} parent=1 // pred_region
      %156 = dma.done [#allocation4], 256
    $region21: #{tpu_custom_call.1} parent=1 // pred_fallthru
      _
    %157 = vsyncpa [#allocation3], 1
    %158 = vsyncpa [#allocation4], 1

</llo_original>
